<compile_context>
chip_gen: v6e
topology: v6e:2x2x1
jax: 0.10.0
libtpu: 0.0.40
codegen_flags: <defaults>
</compile_context>

<pallas_src>
import math

import jax
import jax.numpy as jnp
from jax.experimental import pallas as pl
from jax.experimental.pallas import tpu as pltpu

HIDDEN_LAYER = 50
N_ACTIONS = 10
N_STATES = 4

LANE = 128              # TPU lane width
K_PAD = 8               # N_STATES padded to a sublane multiple (K of fc1 matmul)
H_PAD = LANE            # hidden dim padded to a full lane vector
A_PAD = LANE            # action dim padded to a full lane vector
P_ROWS = 144            # 8 (w1) + 128 (w2) + 1 (b1) + 1 (b2) = 138 -> pad to 144

MAX_TB = 512            # default batch tile (multiple of 8)


def _round_up(x, m):
    return (x + m - 1) // m * m


def mlp_kernel(x_ref, p_ref, o_ref):
    # Static, sublane-aligned views into the packed parameter slab (no data movement).
    w1 = p_ref[0:K_PAD, :]                               # (8, 128)
    w2 = p_ref[K_PAD:K_PAD + H_PAD, :]                   # (128, 128), starts at row 8
    b1 = p_ref[K_PAD + H_PAD:K_PAD + H_PAD + 1, :]       # (1, 128), row 136
    b2 = p_ref[K_PAD + H_PAD + 1:K_PAD + H_PAD + 2, :]   # (1, 128), row 137

    # fc1 + relu   (padded hidden columns: 0*w + 0 bias -> relu(0) = 0)
    h = jnp.dot(x_ref[...], w1, preferred_element_type=jnp.float32) + b1
    h = jnp.maximum(h, 0.0)
    # fc_out       (padded output columns stay 0; sliced off in the wrapper)
    out = jnp.dot(h, w2, preferred_element_type=jnp.float32) + b2
    o_ref[...] = out.astype(o_ref.dtype)


def pack_params(w1, b1, w2, b2):
    """Pack (4,50)/(50,)/(50,10)/(10,) params into one zero-padded (144,128) slab."""
    p = jnp.zeros((P_ROWS, LANE), jnp.float32)
    p = p.at[0:N_STATES, 0:HIDDEN_LAYER].set(w1)                      # rows 0..3
    p = p.at[K_PAD:K_PAD + HIDDEN_LAYER, 0:N_ACTIONS].set(w2)         # rows 8..57
    p = p.at[K_PAD + H_PAD, 0:HIDDEN_LAYER].set(b1)                   # row 136
    p = p.at[K_PAD + H_PAD + 1, 0:N_ACTIONS].set(b2)                  # row 137
    return p


def net_forward(x, params, *, tb=None):
    """x: (B, N_STATES) f32, params: packed (144,128) slab. Returns (B, N_ACTIONS) f32."""
    B = x.shape[0]
    if tb is None:
        tb = min(MAX_TB, _round_up(B, 8))
    B_pad = _round_up(B, tb)

    # Host-side zero padding: batch -> multiple of tb, features -> K_PAD.
    x_p = jnp.zeros((B_pad, K_PAD), jnp.float32).at[:B, :N_STATES].set(x)

    grid = (B_pad // tb,)
    out = pl.pallas_call(
        mlp_kernel,
        out_shape=jax.ShapeDtypeStruct((B_pad, A_PAD), jnp.float32),
        grid_spec=pltpu.PrefetchScalarGridSpec(
            num_scalar_prefetch=0,
            grid=grid,
            in_specs=[
                # activations: batch-tiled, double-buffered by the pipeline
                pl.BlockSpec((tb, K_PAD), lambda i: (i, 0)),
                # packed params: constant block index -> fetched once, VMEM-resident
                pl.BlockSpec((P_ROWS, LANE), lambda i: (0, 0)),
            ],
            # lane-dense (TB, 128) output block -> unmasked stores
            out_specs=pl.BlockSpec((tb, A_PAD), lambda i: (i, 0)),
        ),
        compiler_params=pltpu.CompilerParams(
            dimension_semantics=("parallel",),   # v7x: shard batch over both TCs
        ),
        cost_estimate=pl.CostEstimate(
            flops=2 * B_pad * (K_PAD * H_PAD + H_PAD * A_PAD),
            transcendentals=0,
            bytes_accessed=(x_p.size + P_ROWS * LANE + B_pad * A_PAD) * 4,
        ),
    )(x_p, params)
    return out[:B, :N_ACTIONS]


def init_params(key):
    """Init matching the PyTorch module (explicit kaiming_uniform_/xavier_uniform_)."""
    k1, k2, k3, k4 = jax.random.split(key, 4)

    # fc1.weight: nn.init.kaiming_uniform_(w) with defaults (a=0, leaky_relu)
    #   -> gain=sqrt(2), bound = gain*sqrt(3/fan_in) = sqrt(6/fan_in), fan_in = N_STATES.
    #   (The module calls kaiming_uniform_ explicitly, so this is the right bound —
    #    NOT the nn.Linear default a=sqrt(5) variant.)
    fan_in1 = N_STATES
    bound_w1 = math.sqrt(6.0 / fan_in1)
    w1 = jax.random.uniform(
        k1, (N_STATES, HIDDEN_LAYER), jnp.float32, -bound_w1, bound_w1
    )
    # fc1.bias: PyTorch Linear default uniform(-1/sqrt(fan_in), 1/sqrt(fan_in))
    bound_b1 = 1.0 / math.sqrt(fan_in1)
    b1 = jax.random.uniform(k2, (HIDDEN_LAYER,), jnp.float32, -bound_b1, bound_b1)

    # fc_out.weight: xavier_uniform_ -> bound = sqrt(6 / (fan_in + fan_out))
    fan_in2, fan_out2 = HIDDEN_LAYER, N_ACTIONS
    bound_w2 = math.sqrt(6.0 / (fan_in2 + fan_out2))
    w2 = jax.random.uniform(
        k3, (HIDDEN_LAYER, N_ACTIONS), jnp.float32, -bound_w2, bound_w2
    )
    # fc_out.bias: default uniform(-1/sqrt(fan_in), 1/sqrt(fan_in))
    bound_b2 = 1.0 / math.sqrt(fan_in2)
    b2 = jax.random.uniform(k4, (N_ACTIONS,), jnp.float32, -bound_b2, bound_b2)

    return w1, b1, w2, b2


if __name__ == "__main__":
    key = jax.random.PRNGKey(0)
    k_params, k_x = jax.random.split(key)

    w1, b1, w2, b2 = init_params(k_params)
    params = pack_params(w1, b1, w2, b2)

    def ref_fn(xx):
        return jnp.maximum(xx @ w1 + b1[None, :], 0.0) @ w2 + b2[None, :]

    # Small batch (single grid step).
    B = 8
    x = jax.random.normal(k_x, (B, N_STATES), jnp.float32)
    out = jax.block_until_ready(net_forward(x, params))
    assert out.shape == (B, N_ACTIONS)
    assert jnp.allclose(out, ref_fn(x), atol=1e-5, rtol=1e-5)

    # Batch that exercises the grid + batch-padding path (B=200 -> padded to 256, 4 steps).
    B2 = 200
    x2 = jax.random.normal(k_x, (B2, N_STATES), jnp.float32)
    out2 = jax.block_until_ready(net_forward(x2, params, tb=64))
    assert out2.shape == (B2, N_ACTIONS)
    assert jnp.allclose(out2, ref_fn(x2), atol=1e-5, rtol=1e-5)

    print("KERNEL_OK")
</pallas_src>

<mosaic_0001>
module attributes {stable_mosaic.version = 11 : i64} {
  func.func @mlp_kernel(%arg0: i32, %arg1: memref<8x8xf32, #tpu.memory_space<vmem>>, %arg2: memref<144x128xf32, #tpu.memory_space<vmem>>, %arg3: memref<8x128xf32, #tpu.memory_space<vmem>>) attributes {dimension_semantics = [#tpu.dimension_semantics<parallel>], iteration_bounds = array<i64: 1>, scalar_prefetch = 0 : i64, scratch_operands = 0 : i64, tpu.core_type = #tpu.core_type<tc>, window_params = [{transform_indices = @transform_0, window_bounds = array<i64: 8, 8>}, {pipeline_mode = #tpu.pipeline_mode<synchronous>, transform_indices = @transform_1, window_bounds = array<i64: 144, 128>}, {transform_indices = @transform_2, window_bounds = array<i64: 8, 128>}]} {
    %c0 = arith.constant 0 : index
    %c0_0 = arith.constant 0 : index
    %0 = vector.load %arg2[%c0, %c0_0] : memref<144x128xf32, #tpu.memory_space<vmem>>, vector<8x128xf32>
    %c8 = arith.constant 8 : index
    %c0_1 = arith.constant 0 : index
    %1 = vector.load %arg2[%c8, %c0_1] : memref<144x128xf32, #tpu.memory_space<vmem>>, vector<128x128xf32>
    %c136 = arith.constant 136 : index
    %c0_2 = arith.constant 0 : index
    %2 = vector.load %arg2[%c136, %c0_2] : memref<144x128xf32, #tpu.memory_space<vmem>>, vector<1x128xf32>
    %c137 = arith.constant 137 : index
    %c0_3 = arith.constant 0 : index
    %3 = vector.load %arg2[%c137, %c0_3] : memref<144x128xf32, #tpu.memory_space<vmem>>, vector<1x128xf32>
    %c0_4 = arith.constant 0 : index
    %c0_5 = arith.constant 0 : index
    %4 = vector.load %arg1[%c0_4, %c0_5] : memref<8x8xf32, #tpu.memory_space<vmem>>, vector<8x8xf32>
    %cst = arith.constant dense<0.000000e+00> : vector<8x128xf32>
    %5 = tpu.matmul %4, %0, %cst {dimension_numbers = #tpu.dot_dimension_numbers<[1], [0], [0], [1], [0, 0, 1, 1], [], []>} : vector<8x8xf32>, vector<8x128xf32>, vector<8x128xf32> -> vector<8x128xf32>
    %6 = vector.broadcast %2 : vector<1x128xf32> to vector<8x128xf32>
    %7 = arith.addf %5, %6 : vector<8x128xf32>
    %cst_6 = arith.constant 0.000000e+00 : f32
    %8 = vector.broadcast %cst_6 : f32 to vector<8x128xf32>
    %9 = arith.maximumf %7, %8 : vector<8x128xf32>
    %cst_7 = arith.constant dense<0.000000e+00> : vector<8x128xf32>
    %10 = tpu.matmul %9, %1, %cst_7 {dimension_numbers = #tpu.dot_dimension_numbers<[1], [0], [0], [1], [0, 0, 1, 1], [], []>} : vector<8x128xf32>, vector<128x128xf32>, vector<8x128xf32> -> vector<8x128xf32>
    %11 = vector.broadcast %3 : vector<1x128xf32> to vector<8x128xf32>
    %12 = arith.addf %10, %11 : vector<8x128xf32>
    %c0_8 = arith.constant 0 : index
    %c0_9 = arith.constant 0 : index
    %13 = vector.load %arg3[%c0_8, %c0_9] : memref<8x128xf32, #tpu.memory_space<vmem>>, vector<8x128xf32>
    tpu.vector_store %arg3[%c0_8, %c0_9], %12 {strides = array<i32>} : memref<8x128xf32, #tpu.memory_space<vmem>>, vector<8x128xf32>,
    return
  }
  func.func @transform_0(%arg0: i32) -> (i32, i32) {
    %c0_i32 = arith.constant 0 : i32
    %c0_i32_0 = arith.constant 0 : i32
    return %arg0, %c0_i32 : i32, i32
  }
  func.func @transform_1(%arg0: i32) -> (i32, i32) {
    %c0_i32 = arith.constant 0 : i32
    %c0_i32_0 = arith.constant 0 : i32
    %c0_i32_1 = arith.constant 0 : i32
    return %c0_i32, %c0_i32_0 : i32, i32
  }
  func.func @transform_2(%arg0: i32) -> (i32, i32) {
    %c0_i32 = arith.constant 0 : i32
    %c0_i32_0 = arith.constant 0 : i32
    return %arg0, %c0_i32 : i32, i32
  }
}

</mosaic_0001>

<llo_original>
// kernel: tpu_custom_call.1
$region0: #{tpu_custom_call.1}
  #allocation0 [shape = 'u32[]', space=smem, size = 0x4, offset = 0x4, fixed_abs, tag = 'smem constant byte address 0x4 - core index']
  #allocation1 [shape = 'u32[144,128]{1,0:T(1,128)}', space=vmem, size = 0x12000, scoped, tag = 'internal scratch']
  %s0 = inlined_call_operand.hbm [shape: f32[8,8], index: 0, kind: input, shape index: {}]
  %s1 = inlined_call_operand.hbm [shape: f32[144,128], index: 1, kind: input, shape index: {}]
  %s2 = inlined_call_operand.hbm [shape: f32[8,128], index: 2, kind: output, shape index: {}]
  %s3 = sld [smem:[#allocation0]]
  $region26: #{tpu_custom_call.1} parent=0
    _
  %s5 = ssub.s32 1, %s3
  %s6 = scalar_select 0, %s5, %s3
  $region1: #{tpu_custom_call.1} parent=0
    #allocation2 [shape = 'u8[4096]{0}', space=vmem, size = 0x1000, scoped, tag = 'input window, operand 0, single buffered']
    #allocation3 [shape = 's32[1]{0}', space=sflag, size = 0x4, scoped, tag = 'scoped memory for tpu_custom_call.1']
    #allocation4 [shape = 's32[1]{0}', space=sflag, size = 0x4, scoped, tag = 'scoped memory for tpu_custom_call.1']
    #allocation5 [shape = 'u8[73728]{0}', space=vmem, size = 0x12000, scoped, tag = 'input window, operand 1, single buffered']
    #allocation6 [shape = 's32[1]{0}', space=sflag, size = 0x4, scoped, tag = 'scoped memory for tpu_custom_call.1']
    #allocation7 [shape = 'u8[4096]{0}', space=vmem, size = 0x1000, scoped, tag = 'output window, operand 0, single buffered']
    %7 = vsyncpa [#allocation3], 0
    %8 = vsyncpa [#allocation6], 0
    %9 = vsyncpa [#allocation4], 0
    // Predicated region
    $region2: #{tpu_custom_call.1} parent=1 // pred_check
      _
    $region3: #{tpu_custom_call.1} parent=1 // pred_check_branch
      %11 = sbr.rel (0) target = $region5
    $region4: #{tpu_custom_call.1} parent=1 // pred_region
      %s13 = ssub.s32 128, 128
      %14 = vsyncadd [#allocation3], %s13
      %s16 = sshll.u32 [#allocation2], 4
      %s17 = int_to_ptr.vmem [resolvable:$true] %s16
      %19 = dma.hbm_to_vmem [thread:$0]  %s0, 128, %s17, [#allocation3]
    $region5: #{tpu_custom_call.1} parent=1 // pred_fallthru
      _
    // Predicated region
    $region6: #{tpu_custom_call.1} parent=1 // pred_check
      _
    $region7: #{tpu_custom_call.1} parent=1 // pred_check_branch
      %21 = sbr.rel (0) target = $region9
    $region8: #{tpu_custom_call.1} parent=1 // pred_region
      %s23 = ssub.s32 2304, 2304
      %24 = vsyncadd [#allocation6], %s23
      %s25 = sshll.u32 [#allocation5], 4
      %s26 = int_to_ptr.vmem [resolvable:$true] %s25
      %31 = dma.hbm_to_vmem [thread:$0]  %s1, 2304, %s26, [#allocation6], 128, 128, 8
    $region9: #{tpu_custom_call.1} parent=1 // pred_fallthru
      _
    // Predicated region
    $region10: #{tpu_custom_call.1} parent=1 // pred_check
      _
    $region11: #{tpu_custom_call.1} parent=1 // pred_check_branch
      %33 = sbr.rel (0) target = $region13
    $region12: #{tpu_custom_call.1} parent=1 // pred_region
      %34 = dma.done [#allocation3], 128
    $region13: #{tpu_custom_call.1} parent=1 // pred_fallthru
      _
    // Predicated region
    $region14: #{tpu_custom_call.1} parent=1 // pred_check
      _
    $region15: #{tpu_custom_call.1} parent=1 // pred_check_branch
      %36 = sbr.rel (0) target = $region17
    $region16: #{tpu_custom_call.1} parent=1 // pred_region
      %37 = dma.done [#allocation6], 2304
    $region17: #{tpu_custom_call.1} parent=1 // pred_fallthru
      _
    %v38 = vld [vmem:[#allocation5] sm:$0xff]
    %v39 = vld [vmem:[#allocation5 + $0x8] sm:$0xff]
    %v40 = vld [vmem:[#allocation5 + $0x10] sm:$0xff]
    %v41 = vld [vmem:[#allocation5 + $0x18] sm:$0xff]
    %v42 = vld [vmem:[#allocation5 + $0x20] sm:$0xff]
    %v43 = vld [vmem:[#allocation5 + $0x28] sm:$0xff]
    %v44 = vld [vmem:[#allocation5 + $0x30] sm:$0xff]
    %v45 = vld [vmem:[#allocation5 + $0x38] sm:$0xff]
    %v46 = vld [vmem:[#allocation5 + $0x40] sm:$0xff]
    %v47 = vld [vmem:[#allocation5 + $0x48] sm:$0xff]
    %v48 = vld [vmem:[#allocation5 + $0x50] sm:$0xff]
    %v49 = vld [vmem:[#allocation5 + $0x58] sm:$0xff]
    %v50 = vld [vmem:[#allocation5 + $0x60] sm:$0xff]
    %v51 = vld [vmem:[#allocation5 + $0x68] sm:$0xff]
    %v52 = vld [vmem:[#allocation5 + $0x70] sm:$0xff]
    %v53 = vld [vmem:[#allocation5 + $0x78] sm:$0xff]
    %v54 = vld [vmem:[#allocation5 + $0x80] sm:$0xff]
    %v55 = vld [vmem:[#allocation5 + $0x88] sm:$0x1]
    %v56 = vld [vmem:[#allocation5 + $0x89] sm:$0x1]
    %v57 = vld [vmem:[#allocation2] sm:$0xff]
    %v58 = vlaneseq
    %v59 = vshrl.u32 %v58, 7
    %v60 = vsub.s32 0, %v59
    %v61 = vrot.slane %v55, %v60
    %vm62 = vcmask 64512
    %v64 = vsel %vm62, %v57, 0
    %66 = vmatprep.subr.mxu0 0.0
    %67 = vmatpush1.msra.mxu0 0.0
    %68 = vmatprep.subr.mxu0 0.0
    %69 = vmatpush1.msra.mxu0 0.0
    %70 = vmatprep.subr.mxu0 0.0
    %71 = vmatpush1.msra.mxu0 0.0
    %72 = vmatprep.subr.mxu0 0.0
    %73 = vmatpush1.msra.mxu0 0.0
    %74 = vmatprep.subr.mxu0 0.0
    %75 = vmatpush1.msra.mxu0 0.0
    %76 = vmatprep.subr.mxu0 0.0
    %77 = vmatpush1.msra.mxu0 0.0
    %78 = vmatprep.subr.mxu0 0.0
    %79 = vmatpush1.msra.mxu0 0.0
    %80 = vmatprep.subr.mxu0 0.0
    %81 = vmatpush1.msra.mxu0 0.0
    %82 = vmatprep.subr.mxu0 0.0
    %83 = vmatpush1.msra.mxu0 0.0
    %84 = vmatprep.subr.mxu0 0.0
    %85 = vmatpush1.msra.mxu0 0.0
    %86 = vmatprep.subr.mxu0 0.0
    %87 = vmatpush1.msra.mxu0 0.0
    %88 = vmatprep.subr.mxu0 0.0
    %89 = vmatpush1.msra.mxu0 0.0
    %90 = vmatprep.subr.mxu0 0.0
    %91 = vmatpush1.msra.mxu0 0.0
    %92 = vmatprep.subr.mxu0 0.0
    %93 = vmatpush1.msra.mxu0 0.0
    %94 = vmatprep.subr.mxu0 0.0
    %95 = vmatpush1.msra.mxu0 0.0
    %96 = vmatprep.subr.mxu0 0.0
    %97 = vmatpush1.msra.mxu0 %v38
    %98 = vmatprep.subr.mxu0 0.0
    %99 = vmatpush2.msra.mxu0 0.0
    %100 = vmatprep.subr.mxu0 0.0
    %101 = vmatpush2.msra.mxu0 0.0
    %102 = vmatprep.subr.mxu0 0.0
    %103 = vmatpush2.msra.mxu0 0.0
    %104 = vmatprep.subr.mxu0 0.0
    %105 = vmatpush2.msra.mxu0 0.0
    %106 = vmatprep.subr.mxu0 0.0
    %107 = vmatpush2.msra.mxu0 0.0
    %108 = vmatprep.subr.mxu0 0.0
    %109 = vmatpush2.msra.mxu0 0.0
    %110 = vmatprep.subr.mxu0 0.0
    %111 = vmatpush2.msra.mxu0 0.0
    %112 = vmatprep.subr.mxu0 0.0
    %113 = vmatpush2.msra.mxu0 0.0
    %114 = vmatprep.subr.mxu0 0.0
    %115 = vmatpush2.msra.mxu0 0.0
    %116 = vmatprep.subr.mxu0 0.0
    %117 = vmatpush2.msra.mxu0 0.0
    %118 = vmatprep.subr.mxu0 0.0
    %119 = vmatpush2.msra.mxu0 0.0
    %120 = vmatprep.subr.mxu0 0.0
    %121 = vmatpush2.msra.mxu0 0.0
    %122 = vmatprep.subr.mxu0 0.0
    %123 = vmatpush2.msra.mxu0 0.0
    %124 = vmatprep.subr.mxu0 0.0
    %125 = vmatpush2.msra.mxu0 0.0
    %126 = vmatprep.subr.mxu0 0.0
    %127 = vmatpush2.msra.mxu0 0.0
    %128 = vmatprep.subr.mxu0 0.0
    %129 = vmatpush2.msra.mxu0 0.0
    %130 = vmatprep.mubr.f32.mxu0 0.0
    %131 = vmatmul.mubr.f32.gmra.mxu0 %v64
    %v132 = vpop.f32.mrf.mxu0
    %v133 = vadd.f32 %v61, %v132
    %v134 = vpop.f32.mrf.mxu0
    %135 = vdwg.mxu0
    %v136 = vmax.f32 %v133, 0.0
    %v137 = vlaneseq
    %v138 = vshrl.u32 %v137, 7
    %v139 = vsub.s32 0, %v138
    %v140 = vrot.slane %v56, %v139
    %141 = vmatprep.subr.mxu0 0.0
    %142 = vmatpush1.msra.mxu0 %v54
    %143 = vmatprep.subr.mxu0 0.0
    %144 = vmatpush1.msra.mxu0 %v53
    %145 = vmatprep.subr.mxu0 0.0
    %146 = vmatpush1.msra.mxu0 %v52
    %147 = vmatprep.subr.mxu0 0.0
    %148 = vmatpush1.msra.mxu0 %v51
    %149 = vmatprep.subr.mxu0 0.0
    %150 = vmatpush1.msra.mxu0 %v50
    %151 = vmatprep.subr.mxu0 0.0
    %152 = vmatpush1.msra.mxu0 %v49
    %153 = vmatprep.subr.mxu0 0.0
    %154 = vmatpush1.msra.mxu0 %v48
    %155 = vmatprep.subr.mxu0 0.0
    %156 = vmatpush1.msra.mxu0 %v47
    %157 = vmatprep.subr.mxu0 0.0
    %158 = vmatpush1.msra.mxu0 %v46
    %159 = vmatprep.subr.mxu0 0.0
    %160 = vmatpush1.msra.mxu0 %v45
    %161 = vmatprep.subr.mxu0 0.0
    %162 = vmatpush1.msra.mxu0 %v44
    %163 = vmatprep.subr.mxu0 0.0
    %164 = vmatpush1.msra.mxu0 %v43
    %165 = vmatprep.subr.mxu0 0.0
    %166 = vmatpush1.msra.mxu0 %v42
    %167 = vmatprep.subr.mxu0 0.0
    %168 = vmatpush1.msra.mxu0 %v41
    %169 = vmatprep.subr.mxu0 0.0
    %170 = vmatpush1.msra.mxu0 %v40
    %171 = vmatprep.subr.mxu0 0.0
    %172 = vmatpush1.msra.mxu0 %v39
    %173 = vmatprep.subr.mxu0 0.0
    %174 = vmatpush2.msra.mxu0 0.0
    %175 = vmatprep.subr.mxu0 0.0
    %176 = vmatpush2.msra.mxu0 0.0
    %177 = vmatprep.subr.mxu0 0.0
    %178 = vmatpush2.msra.mxu0 0.0
    %179 = vmatprep.subr.mxu0 0.0
    %180 = vmatpush2.msra.mxu0 0.0
    %181 = vmatprep.subr.mxu0 0.0
    %182 = vmatpush2.msra.mxu0 0.0
    %183 = vmatprep.subr.mxu0 0.0
    %184 = vmatpush2.msra.mxu0 0.0
    %185 = vmatprep.subr.mxu0 0.0
    %186 = vmatpush2.msra.mxu0 0.0
    %187 = vmatprep.subr.mxu0 0.0
    %188 = vmatpush2.msra.mxu0 0.0
    %189 = vmatprep.subr.mxu0 0.0
    %190 = vmatpush2.msra.mxu0 0.0
    %191 = vmatprep.subr.mxu0 0.0
    %192 = vmatpush2.msra.mxu0 0.0
    %193 = vmatprep.subr.mxu0 0.0
    %194 = vmatpush2.msra.mxu0 0.0
    %195 = vmatprep.subr.mxu0 0.0
    %196 = vmatpush2.msra.mxu0 0.0
    %197 = vmatprep.subr.mxu0 0.0
    %198 = vmatpush2.msra.mxu0 0.0
    %199 = vmatprep.subr.mxu0 0.0
    %200 = vmatpush2.msra.mxu0 0.0
    %201 = vmatprep.subr.mxu0 0.0
    %202 = vmatpush2.msra.mxu0 0.0
    %203 = vmatprep.subr.mxu0 0.0
    %204 = vmatpush2.msra.mxu0 0.0
    %205 = vmatprep.mubr.f32.mxu0 0.0
    %206 = vmatmul.mubr.f32.gmra.mxu0 %v136
    %v207 = vpop.f32.mrf.mxu0
    %v208 = vadd.f32 %v140, %v207
    %v209 = vpop.f32.mrf.mxu0
    %210 = vdwg.mxu0
    %211 = vst [vmem:[#allocation7] sm:$0xff] %v208
    // Predicated region
    $region18: #{tpu_custom_call.1} parent=1 // pred_check
      _
    $region19: #{tpu_custom_call.1} parent=1 // pred_check_branch
      %213 = sbr.rel (0) target = $region21
    $region20: #{tpu_custom_call.1} parent=1 // pred_region
      %s215 = ssub.s32 128, 128
      %216 = vsyncadd [#allocation4], %s215
      %s218 = sshll.u32 [#allocation7], 4
      %s219 = int_to_ptr.vmem [resolvable:$true] %s218
      %221 = dma.vmem_to_hbm [thread:$0]  %s219, 128, %s2, [#allocation4]
    $region21: #{tpu_custom_call.1} parent=1 // pred_fallthru
      _
    // Predicated region
    $region22: #{tpu_custom_call.1} parent=1 // pred_check
      _
    $region23: #{tpu_custom_call.1} parent=1 // pred_check_branch
      %223 = sbr.rel (0) target = $region25
    $region24: #{tpu_custom_call.1} parent=1 // pred_region
      %224 = dma.done [#allocation4], 128
    $region25: #{tpu_custom_call.1} parent=1 // pred_fallthru
      _
    %225 = vsyncpa [#allocation3], 1
    %226 = vsyncpa [#allocation6], 1
    %227 = vsyncpa [#allocation4], 1

</llo_original>
